<compile_context>
chip_gen: v6e
topology: v6e:2x2x1
jax: 0.10.0
libtpu: 0.0.40
codegen_flags: <defaults>
</compile_context>

<pallas_src>
import functools

import jax
import jax.numpy as jnp
from jax import lax
from jax.experimental import pallas as pl
from jax.experimental.pallas import tpu as pltpu


# ---------------------------------------------------------------------------
# sa_layer (Shuffle Attention) — fused Pallas kernel
# ---------------------------------------------------------------------------

def _sa_kernel(x_ref, p_ref, o_ref, *, inv_hw, eps):
    """One grid step: rb batch-group rows, both attention branches.

    x_ref : (rb, 2, cg, hw)  contiguous input block; half 0 = channel branch,
                             half 1 = spatial branch.
    p_ref : (cg, 8)          per-channel params [cw, cb, sw, sb, gw, gb, 0, 0];
                             grid-invariant block, stays VMEM resident.
    o_ref : (rb, 2, cg, hw)  pre-concatenated output block.
    """
    # TODO(synk): on v6e/v7x a bf16 fast-path (promote only the reductions to
    # f32) would halve VPU work / vreg pressure; kept f32 here for exactness.
    x0 = x_ref[:, 0, :, :].astype(jnp.float32)
    x1 = x_ref[:, 1, :, :].astype(jnp.float32)
    p = p_ref[...].astype(jnp.float32)

    def col(j):
        return p[:, j:j + 1][None]          # (1, cg, 1): broadcast over rows/lanes

    cw, cb = col(0), col(1)
    sw, sb = col(2), col(3)
    gw, gb = col(4), col(5)

    # Channel branch: global average pool -> per-channel affine -> sigmoid gate.
    mean0 = jnp.sum(x0, axis=-1, keepdims=True) * inv_hw
    gate0 = jax.nn.sigmoid(cw * mean0 + cb)
    o_ref[:, 0, :, :] = (x0 * gate0).astype(o_ref.dtype)

    # Spatial branch: per-(row, channel) GroupNorm over hw.  The block's last
    # dim equals the full hw (no lane-padding in the logical array), so a
    # two-pass centered variance is both exact and cancellation-safe.
    mean1 = jnp.sum(x1, axis=-1, keepdims=True) * inv_hw
    xc = x1 - mean1
    var1 = jnp.sum(xc * xc, axis=-1, keepdims=True) * inv_hw
    xhat = xc * lax.rsqrt(var1 + eps)
    xs = xhat * gw + gb
    gate1 = jax.nn.sigmoid(sw * xs + sb)
    o_ref[:, 1, :, :] = (x1 * gate1).astype(o_ref.dtype)


def sa_layer_forward(x, cweight, cbias, sweight, sbias, gn_weight, gn_bias,
                     *, groups=8, eps=1e-5):
    """Pallas implementation of sa_layer.forward; x is NCHW (b, c, h, w)."""
    b, c, h, w = x.shape
    assert c % (2 * groups) == 0
    cg = c // (2 * groups)                 # channels per half-group
    bg = b * groups
    hw = h * w

    # (b, c, h, w) -> (bg, 2, cg, hw): pure reshape, no HBM copy.  No hw or cg
    # padding: the block's last two dims equal the full array dims, so any
    # ragged lane tail becomes one masked store instead of an extra pad + crop
    # HBM round trip.
    x4 = x.reshape(bg, 2, cg, hw)

    # Per-channel parameter table (cg, 8); grid-invariant -> VMEM-resident.
    zeros = jnp.zeros((cg,), jnp.float32)
    p = jnp.stack(
        [cweight.reshape(cg).astype(jnp.float32),
         cbias.reshape(cg).astype(jnp.float32),
         sweight.reshape(cg).astype(jnp.float32),
         sbias.reshape(cg).astype(jnp.float32),
         gn_weight.reshape(cg).astype(jnp.float32),
         gn_bias.reshape(cg).astype(jnp.float32),
         zeros, zeros], axis=-1)

    # ---- block sizing -------------------------------------------------------
    # The kernel is purely HBM-bandwidth bound: small-ish blocks + a deep grid
    # pipeline win.  Target ~1-2 MiB per block buffer and >= 8 grid steps
    # (>= 4 per TensorCore on v7x megacore) so the first block's fill DMA and
    # the last block's writeback overlap with neighbouring steps.
    itemsize = jnp.dtype(x.dtype).itemsize
    sublane = max(8, 8 * (4 // max(1, itemsize)))        # 8 f32, 16 bf16, 32 int8
    pad_cg = -(-cg // sublane) * sublane                 # sublane-padded cg slab
    pad_hw = -(-hw // 128) * 128                         # lane-padded hw
    per_row_bytes = 2 * pad_cg * pad_hw * itemsize       # one bg-row of a block

    target_block_bytes = 2 * 1024 * 1024                 # ~2 MiB per block buffer
    min_steps = 8
    rb_bytes_cap = max(1, target_block_bytes // per_row_bytes)
    rb_steps_cap = max(1, bg // min_steps)
    rb_limit = int(max(1, min(bg, rb_bytes_cap, rb_steps_cap)))
    # Largest divisor of bg within the limit: no row padding, no partial blocks.
    rb = max(d for d in range(1, rb_limit + 1) if bg % d == 0)
    grid = (bg // rb,)

    # VMEM actually live: (input + output) blocks double-buffered + params.
    try:
        vmem_cap = int(pltpu.get_tpu_info().vmem_capacity_bytes)
    except Exception:                        # conservative fallback (v7x: 64 MiB)
        vmem_cap = 64 * 1024 * 1024
    live_bytes = 2 * 2 * rb * per_row_bytes + pad_cg * 128 * 4
    vmem_limit = int(min(vmem_cap * 3 // 4,
                         max(32 * 1024 * 1024, 4 * live_bytes)))

    kernel = functools.partial(_sa_kernel, inv_hw=1.0 / hw, eps=eps)
    out4 = pl.pallas_call(
        kernel,
        out_shape=jax.ShapeDtypeStruct((bg, 2, cg, hw), x.dtype),
        grid_spec=pltpu.PrefetchScalarGridSpec(
            num_scalar_prefetch=0,
            grid=grid,
            in_specs=[
                # One contiguous (rb, 2, cg, hw) block per step: a single DMA
                # per row, matching the output block layout exactly.
                # TODO(synk): sweep pipeline_mode=pl.Buffered(3) here for very
                # shallow grids where DMA latency peeks past 2-deep buffering.
                pl.BlockSpec((rb, 2, cg, hw), lambda i: (i, 0, 0, 0)),
                pl.BlockSpec((cg, 8), lambda i: (0, 0)),
            ],
            out_specs=pl.BlockSpec((rb, 2, cg, hw), lambda i: (i, 0, 0, 0)),
        ),
        compiler_params=pltpu.CompilerParams(
            dimension_semantics=("parallel",),
            vmem_limit_bytes=vmem_limit),
    )(x4, p)

    out = out4.reshape(b, c, h, w)
    # channel_shuffle(out, 2): a single XLA transpose; the `+ fea` residual in
    # single_block_forward is elementwise and fuses into the same pass under
    # jit, so no extra HBM round trips are added after the kernel.
    out = (out.reshape(b, 2, c // 2, h, w)
              .transpose(0, 2, 1, 3, 4)
              .reshape(b, c, h, w))
    return out


def sa_layer_reference(x, cweight, cbias, sweight, sbias, gn_weight, gn_bias,
                       *, groups=8, eps=1e-5):
    """Pure-JAX reference mirroring the PyTorch sa_layer.forward exactly."""
    b, c, h, w = x.shape
    cg = c // (2 * groups)
    xr = x.reshape(b * groups, -1, h, w)
    x0, x1 = xr[:, :cg], xr[:, cg:]

    xn = jnp.mean(x0, axis=(2, 3), keepdims=True)
    xn = cweight * xn + cbias
    xn = x0 * jax.nn.sigmoid(xn)

    mu = jnp.mean(x1, axis=(2, 3), keepdims=True)
    var = jnp.mean((x1 - mu) ** 2, axis=(2, 3), keepdims=True)
    xs = (x1 - mu) / jnp.sqrt(var + eps)
    xs = xs * gn_weight.reshape(1, cg, 1, 1) + gn_bias.reshape(1, cg, 1, 1)
    xs = sweight * xs + sbias
    xs = x1 * jax.nn.sigmoid(xs)

    out = jnp.concatenate([xn, xs], axis=1).reshape(b, c, h, w)
    out = (out.reshape(b, 2, c // 2, h, w)
              .transpose(0, 2, 1, 3, 4)
              .reshape(b, c, h, w))
    return out


# ---------------------------------------------------------------------------
# Conv / BN plumbing for WIRW and SCF (WCRW) — plain JAX / XLA (MXU)
# ---------------------------------------------------------------------------

def _conv2d(x, w, b=None, *, padding="VALID"):
    y = lax.conv_general_dilated(
        x, w, window_strides=(1, 1), padding=padding,
        dimension_numbers=("NCHW", "OIHW", "NCHW"))
    if b is not None:
        y = y + b.reshape(1, -1, 1, 1)
    return y


def _batchnorm(x, gamma, beta, mean, var, eps=1e-5):
    # TODO(synk): inference-mode BatchNorm (running stats); training-mode batch
    # statistics are not replicated.
    scale = (gamma * lax.rsqrt(var + eps)).reshape(1, -1, 1, 1)
    shift = beta.reshape(1, -1, 1, 1) - mean.reshape(1, -1, 1, 1) * scale
    return x * scale + shift


def _wrw_forward(p, x):
    """Shared forward for WIRW / WCRW.  weight_norm is a reparameterization and
    is folded into the plain conv weights; Scale(1) multipliers are kept."""
    y = jax.nn.relu(_conv2d(x, p["w1"], p["b1"]))               # 1x1 expand
    y = _conv2d(y, p["w2"], p["b2"])                             # 1x1 squeeze
    y = _conv2d(y, p["w3"], p["b3"], padding=((1, 1), (1, 1)))   # 3x3
    z = _conv2d(x, p["conv_w"])                                  # BasicConv2d
    z = jax.nn.relu(_batchnorm(z, p["bn_g"], p["bn_b"], p["bn_m"], p["bn_v"]))
    return p["res_scale"] * y + p["x_scale"] * z


def single_block_forward(params, fea, *, groups=8, sa_impl=sa_layer_forward):
    """Single_Block.forward: fea_dis = sa_layer(SCF(fea, WIRW(fea))) + fea."""
    fea_enh = _wrw_forward(params["wirw"], fea)
    scf = params["scf"]
    inp = jnp.concatenate([scf["scale_x1"] * fea, scf["scale_x2"] * fea_enh],
                          axis=1)
    fused = _wrw_forward(scf["fuse1"], inp)
    sa = params["sa"]
    out = sa_impl(fused, sa["cweight"], sa["cbias"], sa["sweight"],
                  sa["sbias"], sa["gn_weight"], sa["gn_bias"], groups=groups)
    return out + fea


# ---------------------------------------------------------------------------
# Deterministic parameter construction
# ---------------------------------------------------------------------------

def _init_wrw(key, in_c, mid_c, out_c, scale=0.05):
    ks = jax.random.split(key, 7)
    hid = in_c * 6
    n = jax.random.normal
    return dict(
        w1=scale * n(ks[0], (hid, in_c, 1, 1), jnp.float32),
        b1=scale * n(ks[1], (hid,), jnp.float32),
        w2=scale * n(ks[2], (mid_c, hid, 1, 1), jnp.float32),
        b2=scale * n(ks[3], (mid_c,), jnp.float32),
        w3=scale * n(ks[4], (out_c, mid_c, 3, 3), jnp.float32),
        b3=scale * n(ks[5], (out_c,), jnp.float32),
        conv_w=scale * n(ks[6], (out_c, in_c, 1, 1), jnp.float32),
        bn_g=jnp.ones((out_c,), jnp.float32),
        bn_b=jnp.zeros((out_c,), jnp.float32),
        bn_m=jnp.zeros((out_c,), jnp.float32),
        bn_v=jnp.ones((out_c,), jnp.float32),
        res_scale=jnp.float32(1.0),
        x_scale=jnp.float32(1.0),
    )


def init_single_block(key, nf, *, groups=8):
    k1, k2, k3 = jax.random.split(key, 3)
    cg = nf // (2 * groups)
    kc = jax.random.split(k3, 6)
    n = jax.random.normal
    # sa_layer params are randomly perturbed (instead of the all-zero/one torch
    # init) so the affine + gate paths are numerically exercised by the test.
    sa = dict(
        cweight=0.5 * n(kc[0], (1, cg, 1, 1), jnp.float32),
        cbias=jnp.ones((1, cg, 1, 1), jnp.float32)
              + 0.2 * n(kc[1], (1, cg, 1, 1), jnp.float32),
        sweight=0.5 * n(kc[2], (1, cg, 1, 1), jnp.float32),
        sbias=jnp.ones((1, cg, 1, 1), jnp.float32)
              + 0.2 * n(kc[3], (1, cg, 1, 1), jnp.float32),
        gn_weight=jnp.ones((cg,), jnp.float32) + 0.2 * n(kc[4], (cg,), jnp.float32),
        gn_bias=0.2 * n(kc[5], (cg,), jnp.float32),
    )
    return dict(
        wirw=_init_wrw(k1, nf, nf // 2, nf),                 # WIRW(nf)
        scf=dict(scale_x1=jnp.float32(1.0), scale_x2=jnp.float32(1.0),
                 fuse1=_init_wrw(k2, 2 * nf, nf, nf)),       # WCRW(2*nf)
        sa=sa,
    )


# ---------------------------------------------------------------------------
# Smoke test
# ---------------------------------------------------------------------------

if __name__ == "__main__":
    key = jax.random.PRNGKey(0)
    B, NF, H, W = 2, 32, 16, 16          # nf must be divisible by 2*groups
    GROUPS = 8

    k_x, k_p = jax.random.split(key)
    x = jax.random.normal(k_x, (B, NF, H, W), jnp.float32)
    params = init_single_block(k_p, NF, groups=GROUPS)

    fwd_pallas = jax.jit(functools.partial(single_block_forward,
                                           groups=GROUPS,
                                           sa_impl=sa_layer_forward))
    fwd_ref = jax.jit(functools.partial(single_block_forward,
                                        groups=GROUPS,
                                        sa_impl=sa_layer_reference))

    out = jax.block_until_ready(fwd_pallas(params, x))
    ref = jax.block_until_ready(fwd_ref(params, x))

    assert out.shape == (B, NF, H, W)
    max_err = float(jnp.max(jnp.abs(out - ref)))
    assert jnp.allclose(out, ref, atol=1e-4, rtol=1e-4), f"mismatch: {max_err}"

    print("KERNEL_OK")
</pallas_src>

<mosaic_0001>
module attributes {stable_mosaic.version = 11 : i64} {
  func.func @_sa_kernel(%arg0: i32, %arg1: memref<2x2x2x256xf32, #tpu.memory_space<vmem>>, %arg2: memref<2x8xf32, #tpu.memory_space<vmem>>, %arg3: memref<2x2x2x256xf32, #tpu.memory_space<vmem>>) attributes {dimension_semantics = [#tpu.dimension_semantics<parallel>], iteration_bounds = array<i64: 8>, scalar_prefetch = 0 : i64, scratch_operands = 0 : i64, tpu.core_type = #tpu.core_type<tc>, window_params = [{transform_indices = @transform_0, window_bounds = array<i64: 2, 2, 2, 256>}, {pipeline_mode = #tpu.pipeline_mode<synchronous>, transform_indices = @transform_1, window_bounds = array<i64: 2, 8>}, {transform_indices = @transform_2, window_bounds = array<i64: 2, 2, 2, 256>}]} {
    %c0 = arith.constant 0 : index
    %c0_0 = arith.constant 0 : index
    %c0_1 = arith.constant 0 : index
    %c0_2 = arith.constant 0 : index
    %0 = vector.load %arg1[%c0, %c0_0, %c0_1, %c0_2] : memref<2x2x2x256xf32, #tpu.memory_space<vmem>>, vector<2x1x2x256xf32>
    %1 = vector.shape_cast %0 : vector<2x1x2x256xf32> to vector<2x2x256xf32>
    %c0_3 = arith.constant 0 : index
    %c1 = arith.constant 1 : index
    %c0_4 = arith.constant 0 : index
    %c0_5 = arith.constant 0 : index
    %2 = vector.load %arg1[%c0_3, %c1, %c0_4, %c0_5] : memref<2x2x2x256xf32, #tpu.memory_space<vmem>>, vector<2x1x2x256xf32>
    %3 = vector.shape_cast %2 : vector<2x1x2x256xf32> to vector<2x2x256xf32>
    %c0_6 = arith.constant 0 : index
    %c0_7 = arith.constant 0 : index
    %4 = vector.load %arg2[%c0_6, %c0_7] : memref<2x8xf32, #tpu.memory_space<vmem>>, vector<2x8xf32>
    %5 = vector.extract_strided_slice %4 {offsets = [0, 0], sizes = [2, 1], strides = [1, 1]} : vector<2x8xf32> to vector<2x1xf32>
    %6 = vector.shape_cast %5 : vector<2x1xf32> to vector<1x2x1xf32>
    %7 = vector.extract_strided_slice %4 {offsets = [0, 1], sizes = [2, 1], strides = [1, 1]} : vector<2x8xf32> to vector<2x1xf32>
    %8 = vector.shape_cast %7 : vector<2x1xf32> to vector<1x2x1xf32>
    %9 = vector.extract_strided_slice %4 {offsets = [0, 2], sizes = [2, 1], strides = [1, 1]} : vector<2x8xf32> to vector<2x1xf32>
    %10 = vector.shape_cast %9 : vector<2x1xf32> to vector<1x2x1xf32>
    %11 = vector.extract_strided_slice %4 {offsets = [0, 3], sizes = [2, 1], strides = [1, 1]} : vector<2x8xf32> to vector<2x1xf32>
    %12 = vector.shape_cast %11 : vector<2x1xf32> to vector<1x2x1xf32>
    %13 = vector.extract_strided_slice %4 {offsets = [0, 4], sizes = [2, 1], strides = [1, 1]} : vector<2x8xf32> to vector<2x1xf32>
    %14 = vector.shape_cast %13 : vector<2x1xf32> to vector<1x2x1xf32>
    %15 = vector.extract_strided_slice %4 {offsets = [0, 5], sizes = [2, 1], strides = [1, 1]} : vector<2x8xf32> to vector<2x1xf32>
    %16 = vector.shape_cast %15 : vector<2x1xf32> to vector<1x2x1xf32>
    %cst = arith.constant dense<0.000000e+00> : vector<2x2xf32>
    %17 = vector.multi_reduction <add>, %1, %cst [2] : vector<2x2x256xf32> to vector<2x2xf32>
    %18 = vector.shape_cast %17 : vector<2x2xf32> to vector<2x2x1xf32>
    %cst_8 = arith.constant 3.906250e-03 : f32
    %19 = vector.broadcast %cst_8 : f32 to vector<2x2x1xf32>
    %20 = arith.mulf %18, %19 : vector<2x2x1xf32>
    %21 = vector.broadcast %6 : vector<1x2x1xf32> to vector<2x2x1xf32>
    %22 = arith.mulf %21, %20 : vector<2x2x1xf32>
    %23 = vector.broadcast %8 : vector<1x2x1xf32> to vector<2x2x1xf32>
    %24 = arith.addf %22, %23 : vector<2x2x1xf32>
    %25 = arith.negf %24 : vector<2x2x1xf32>
    %26 = math.exp %25 : vector<2x2x1xf32>
    %cst_9 = arith.constant 1.000000e+00 : f32
    %27 = vector.broadcast %cst_9 : f32 to vector<2x2x1xf32>
    %28 = arith.addf %27, %26 : vector<2x2x1xf32>
    %29 = arith.divf %27, %28 : vector<2x2x1xf32>
    %30 = vector.broadcast %29 : vector<2x2x1xf32> to vector<2x2x256xf32>
    %31 = arith.mulf %1, %30 : vector<2x2x256xf32>
    %c0_10 = arith.constant 0 : index
    %c0_11 = arith.constant 0 : index
    %c0_12 = arith.constant 0 : index
    %c0_13 = arith.constant 0 : index
    %32 = vector.load %arg3[%c0_10, %c0_11, %c0_12, %c0_13] : memref<2x2x2x256xf32, #tpu.memory_space<vmem>>, vector<2x1x2x256xf32>
    %33 = vector.shape_cast %32 : vector<2x1x2x256xf32> to vector<2x2x256xf32>
    %34 = vector.shape_cast %31 : vector<2x2x256xf32> to vector<2x1x2x256xf32>
    tpu.vector_store %arg3[%c0_10, %c0_11, %c0_12, %c0_13], %34 {strides = array<i32>} : memref<2x2x2x256xf32, #tpu.memory_space<vmem>>, vector<2x1x2x256xf32>,
    %cst_14 = arith.constant dense<0.000000e+00> : vector<2x2xf32>
    %35 = vector.multi_reduction <add>, %3, %cst_14 [2] : vector<2x2x256xf32> to vector<2x2xf32>
    %36 = vector.shape_cast %35 : vector<2x2xf32> to vector<2x2x1xf32>
    %cst_15 = arith.constant 3.906250e-03 : f32
    %37 = vector.broadcast %cst_15 : f32 to vector<2x2x1xf32>
    %38 = arith.mulf %36, %37 : vector<2x2x1xf32>
    %39 = vector.broadcast %38 : vector<2x2x1xf32> to vector<2x2x256xf32>
    %40 = arith.subf %3, %39 : vector<2x2x256xf32>
    %41 = arith.mulf %40, %40 : vector<2x2x256xf32>
    %cst_16 = arith.constant dense<0.000000e+00> : vector<2x2xf32>
    %42 = vector.multi_reduction <add>, %41, %cst_16 [2] : vector<2x2x256xf32> to vector<2x2xf32>
    %43 = vector.shape_cast %42 : vector<2x2xf32> to vector<2x2x1xf32>
    %cst_17 = arith.constant 3.906250e-03 : f32
    %44 = vector.broadcast %cst_17 : f32 to vector<2x2x1xf32>
    %45 = arith.mulf %43, %44 : vector<2x2x1xf32>
    %cst_18 = arith.constant 9.99999974E-6 : f32
    %46 = vector.broadcast %cst_18 : f32 to vector<2x2x1xf32>
    %47 = arith.addf %45, %46 : vector<2x2x1xf32>
    %48 = math.rsqrt %47 : vector<2x2x1xf32>
    %49 = vector.broadcast %48 : vector<2x2x1xf32> to vector<2x2x256xf32>
    %50 = arith.mulf %40, %49 : vector<2x2x256xf32>
    %51 = vector.broadcast %14 : vector<1x2x1xf32> to vector<2x2x256xf32>
    %52 = arith.mulf %50, %51 : vector<2x2x256xf32>
    %53 = vector.broadcast %16 : vector<1x2x1xf32> to vector<2x2x256xf32>
    %54 = arith.addf %52, %53 : vector<2x2x256xf32>
    %55 = vector.broadcast %10 : vector<1x2x1xf32> to vector<2x2x256xf32>
    %56 = arith.mulf %55, %54 : vector<2x2x256xf32>
    %57 = vector.broadcast %12 : vector<1x2x1xf32> to vector<2x2x256xf32>
    %58 = arith.addf %56, %57 : vector<2x2x256xf32>
    %59 = arith.negf %58 : vector<2x2x256xf32>
    %60 = math.exp %59 : vector<2x2x256xf32>
    %cst_19 = arith.constant 1.000000e+00 : f32
    %61 = vector.broadcast %cst_19 : f32 to vector<2x2x256xf32>
    %62 = arith.addf %61, %60 : vector<2x2x256xf32>
    %63 = arith.divf %61, %62 : vector<2x2x256xf32>
    %64 = arith.mulf %3, %63 : vector<2x2x256xf32>
    %c0_20 = arith.constant 0 : index
    %c1_21 = arith.constant 1 : index
    %c0_22 = arith.constant 0 : index
    %c0_23 = arith.constant 0 : index
    %65 = vector.load %arg3[%c0_20, %c1_21, %c0_22, %c0_23] : memref<2x2x2x256xf32, #tpu.memory_space<vmem>>, vector<2x1x2x256xf32>
    %66 = vector.shape_cast %65 : vector<2x1x2x256xf32> to vector<2x2x256xf32>
    %67 = vector.shape_cast %64 : vector<2x2x256xf32> to vector<2x1x2x256xf32>
    tpu.vector_store %arg3[%c0_20, %c1_21, %c0_22, %c0_23], %67 {strides = array<i32>} : memref<2x2x2x256xf32, #tpu.memory_space<vmem>>, vector<2x1x2x256xf32>,
    return
  }
  func.func @transform_0(%arg0: i32) -> (i32, i32, i32, i32) {
    %c0_i32 = arith.constant 0 : i32
    %c0_i32_0 = arith.constant 0 : i32
    %c0_i32_1 = arith.constant 0 : i32
    %c0_i32_2 = arith.constant 0 : i32
    return %arg0, %c0_i32, %c0_i32_0, %c0_i32_1 : i32, i32, i32, i32
  }
  func.func @transform_1(%arg0: i32) -> (i32, i32) {
    %c0_i32 = arith.constant 0 : i32
    %c0_i32_0 = arith.constant 0 : i32
    %c0_i32_1 = arith.constant 0 : i32
    return %c0_i32, %c0_i32_0 : i32, i32
  }
  func.func @transform_2(%arg0: i32) -> (i32, i32, i32, i32) {
    %c0_i32 = arith.constant 0 : i32
    %c0_i32_0 = arith.constant 0 : i32
    %c0_i32_1 = arith.constant 0 : i32
    %c0_i32_2 = arith.constant 0 : i32
    return %arg0, %c0_i32, %c0_i32_0, %c0_i32_1 : i32, i32, i32, i32
  }
}

</mosaic_0001>

<llo_original>
// kernel: single_block_forward.1
$region0: #{single_block_forward.1}
  #allocation0 [shape = 'u32[]', space=smem, size = 0x4, offset = 0x4, fixed_abs, tag = 'smem constant byte address 0x4 - core index']
  #allocation1 [shape = 'u32[144,128]{1,0:T(1,128)}', space=vmem, size = 0x12000, scoped, tag = 'internal scratch']
  %s0 = inlined_call_operand.vmem [shape: f32[16,2,2,256], index: 0, kind: input, shape index: {}]
  %s1 = inlined_call_operand.vmem [shape: f32[2,8], index: 1, kind: input, shape index: {}]
  %s2 = inlined_call_operand.vmem [shape: f32[16,2,2,256], index: 2, kind: output, shape index: {}]
  %s3 = sld [smem:[#allocation0]]
  $region41: #{single_block_forward.1} parent=0
    _
  %s5 = ssub.s32 1, %s3
  %s6 = scalar_select 0, %s5, %s3
  loop: start=0, step=1, limit=10
  $region2: #{single_block_forward.1} parent=0 // loop_pre_header
    _
  $region3: #{single_block_forward.1} parent=0 // loop_header
    %s8 = sphi 0, %s12
    %p9 = scmp.ge.s32.totalorder %s8, 10
    %s18 = sphi 0, %s20
    %s21 = sphi 0, %s18
    %s22 = sphi 0, %s21
    %s38 = sphi 0, %s22
    %s42 = sphi 0, %s42
    %s44 = sphi 0, %s42
    %s45 = sphi 0, %s44
    %s59 = sphi 0, %s45
    %s65 = sphi 0, %s67
    %s68 = sphi 0, %s65
    %s69 = sphi 0, %s68
    %s85 = sphi 0, %s69
  $region4: #{single_block_forward.1} parent=0 // loop_header_branch
    %11 = sbr.rel (%p9) target = $region8
  $region5: #{single_block_forward.1} parent=0 // loop_body
    %s13 = ssub.s32 %s8, 1
    %s14 = ssub.s32 %s8, 2
    %s15 = sadd.s32 %s8, 1
    %s16 = ssub.s32 %s8, %s15
    %p17 = scmp.eq.s32.totalorder %s16, 0
    %s19 = sadd.s32 %s18, 1
    %s20 = scalar_select %p17, %s18, %s19
    %p23 = pneg %p17
    %p24 = scmp.eq.s32.totalorder %s8, 7
    %p25 = por %p23, %p24
    %p26 = scmp.ne.s32.totalorder %s18, %s21
    %p27 = scmp.eq.s32.totalorder %s8, 0
    %p28 = por %p26, %p27
    %p29 = scmp.ne.s32.totalorder %s18, %s21
    %p30 = scmp.eq.s32.totalorder %s13, 7
    %p31 = por %p29, %p30
    %p32 = scmp.ne.s32.totalorder %s21, %s22
    %p33 = scmp.eq.s32.totalorder %s13, 0
    %p34 = por %p32, %p33
    %p35 = scmp.ne.s32.totalorder %s21, %s22
    %p36 = scmp.eq.s32.totalorder %s14, 7
    %p37 = por %p35, %p36
    %p39 = scmp.ne.s32.totalorder %s22, %s38
    %p40 = scmp.eq.s32.totalorder %s14, 0
    %p41 = por %p39, %p40
    %s43 = sadd.s32 %s42, 1
    %p46 = scmp.eq.s32.totalorder %s8, 7
    %p47 = scmp.ne.s32.totalorder %s42, %s44
    %p48 = scmp.eq.s32.totalorder %s8, 0
    %p49 = por %p47, %p48
    %p50 = scmp.ne.s32.totalorder %s42, %s44
    %p51 = scmp.eq.s32.totalorder %s13, 7
    %p52 = por %p50, %p51
    %p53 = scmp.ne.s32.totalorder %s44, %s45
    %p54 = scmp.eq.s32.totalorder %s13, 0
    %p55 = por %p53, %p54
    %p56 = scmp.ne.s32.totalorder %s44, %s45
    %p57 = scmp.eq.s32.totalorder %s14, 7
    %p58 = por %p56, %p57
    %p60 = scmp.ne.s32.totalorder %s45, %s59
    %p61 = scmp.eq.s32.totalorder %s14, 0
    %p62 = por %p60, %p61
    %s63 = ssub.s32 %s8, %s15
    %p64 = scmp.eq.s32.totalorder %s63, 0
    %s66 = sadd.s32 %s65, 1
    %s67 = scalar_select %p64, %s65, %s66
    %p70 = pneg %p64
    %p71 = scmp.eq.s32.totalorder %s8, 7
    %p72 = por %p70, %p71
    %p73 = scmp.ne.s32.totalorder %s65, %s68
    %p74 = scmp.eq.s32.totalorder %s8, 0
    %p75 = por %p73, %p74
    %p76 = scmp.ne.s32.totalorder %s65, %s68
    %p77 = scmp.eq.s32.totalorder %s13, 7
    %p78 = por %p76, %p77
    %p79 = scmp.ne.s32.totalorder %s68, %s69
    %p80 = scmp.eq.s32.totalorder %s13, 0
    %p81 = por %p79, %p80
    %p82 = scmp.ne.s32.totalorder %s68, %s69
    %p83 = scmp.eq.s32.totalorder %s14, 7
    %p84 = por %p82, %p83
    %p86 = scmp.ne.s32.totalorder %s69, %s85
    %p87 = scmp.eq.s32.totalorder %s14, 0
    %p88 = por %p86, %p87
    %p89 = scmp.le.s32.totalorder 1, %s8
    %p90 = scmp.lt.s32.totalorder %s8, 9
    %p91 = pnand %p89, %p90
    %p92 = pneg %p91
    // Predicated region
    $region9: #{single_block_forward.1} parent=5 // pred_check
      _
    $region10: #{single_block_forward.1} parent=5 // pred_check_branch
      %94 = sbr.rel (%p91) target = $region12
    $region11: #{single_block_forward.1} parent=5 // pred_region
      %s95 = ssub.s32 %s8, 1
      // Predicated region
      $region13: #{single_block_forward.1} parent=11 // pred_check
        %p96 = pneg %p55
      $region14: #{single_block_forward.1} parent=11 // pred_check_branch
        %98 = sbr.rel (%p96) target = $region16
      $region15: #{single_block_forward.1} parent=11 // pred_region
        _
      $region16: #{single_block_forward.1} parent=11 // pred_fallthru
        _
    $region12: #{single_block_forward.1} parent=5 // pred_fallthru
      _
    %p99 = scmp.lt.s32.totalorder %s8, 8
    // Predicated region
    $region17: #{single_block_forward.1} parent=5 // pred_check
      %p100 = pneg %p99
    $region18: #{single_block_forward.1} parent=5 // pred_check_branch
      %102 = sbr.rel (%p100) target = $region20
    $region19: #{single_block_forward.1} parent=5 // pred_region
      // Predicated region
      $region21: #{single_block_forward.1} parent=19 // pred_check
        %p103 = pneg %p28
      $region22: #{single_block_forward.1} parent=19 // pred_check_branch
        %105 = sbr.rel (%p103) target = $region24
      $region23: #{single_block_forward.1} parent=19 // pred_region
        %s106 = smul.u32 2, %s8
        %p107 = scmp.lt.s32.totalorder %s106, 15
        %s108 = scalar_select %p107, %s106, 15
        %s109 = smul.addr %s108, 4
        %s110 = smul.addr %s109, 2
        %s111 = scalar_lea.vmem %s0, %s110
        %s112 = smul.u32 2, %s8
      $region24: #{single_block_forward.1} parent=19 // pred_fallthru
        _
    $region20: #{single_block_forward.1} parent=5 // pred_fallthru
      _
    %p113 = scmp.le.s32.totalorder 1, %s8
    %p114 = scmp.lt.s32.totalorder %s8, 9
    %p115 = pnand %p113, %p114
    %p116 = pneg %p115
    // Predicated region
    $region25: #{single_block_forward.1} parent=5 // pred_check
      _
    $region26: #{single_block_forward.1} parent=5 // pred_check_branch
      %118 = sbr.rel (%p115) target = $region28
    $region27: #{single_block_forward.1} parent=5 // pred_region
      %s119 = ssub.s32 %s8, 1
      %s120 = smul.u32 2, %s13
      %p121 = scmp.lt.s32.totalorder %s120, 15
      %s122 = scalar_select %p121, %s120, 15
      %s123 = smul.addr %s122, 4
      %s124 = smul.addr %s123, 2
      %s125 = scalar_lea.vmem %s0, %s124
      %p126 = pneg %p34
      %p127 = pneg %p31
      %p128 = pneg %p55
      %p129 = pneg %p52
      %p130 = pneg %p81
      %p131 = pneg %p78
      %s132 = smul.u32 2, %s13
      %p133 = scmp.lt.s32.totalorder %s132, 15
      %s134 = scalar_select %p133, %s132, 15
      %s135 = smul.addr %s134, 4
      %s136 = smul.addr %s135, 2
      %s137 = scalar_lea.vmem %s2, %s136
      %s138 = smul.u32 2, %s13
      %p139 = scmp.lt.s32.totalorder %s138, 15
      %s140 = scalar_select %p139, %s138, 15
      %s141 = smul.addr %s140, 4
      %s142 = smul.addr %s141, 2
      %s143 = scalar_lea.vmem %s0, %s142
      %s144 = smul.u32 2, %s13
      %s145 = smul.u32 2, %s13
      %p146 = scmp.lt.s32.totalorder %s145, 15
      %s147 = scalar_select %p146, %s145, 15
      %s148 = smul.addr %s147, 4
      %s149 = smul.addr %s148, 2
      %s150 = scalar_lea.vmem %s2, %s149
      %s151 = smul.u32 2, %s13
      %v152 = vld [vmem:[%s143] sm:$0xf]
      %v153 = vld [vmem:[%s143 + $0x8] sm:$0xf]
      %s154 = scalar_lea.vmem %s143, 4
      %v155 = vld [vmem:[%s154] sm:$0xf]
      %v156 = vld [vmem:[%s154 + $0x8] sm:$0xf]
      %v157 = vld [vmem:[%s1] sm:$0x3]
      %v161 = vunpack.c.l.s4 1983009808
      %v162 = vunpack.c.0.s8 %v161
      %v163 = vlaneseq
      %v164 = vshrl.u32 %v163, 7
      %v165 = vsub.s32 %v162, %v164
      %v166 = vrot.slane %v152, %v165
      %v167 = vcombine.high %v166, %v166
      %v169 = vunpack.c.l.s4 1983009808
      %v170 = vunpack.c.0.s8 %v169
      %v171 = vlaneseq
      %v172 = vshrl.u32 %v171, 7
      %v173 = vsub.s32 %v170, %v172
      %v174 = vrot.slane %v153, %v173
      %v175 = vcombine.high %v174, %v174
      %vm180 = vcmask 1041408
      %v181 = vsel %vm180, %v166, 0.0
      %v182 = vsel %vm180, %v167, 0.0
      %v183 = vadd.f32 %v181, %v182
      %184 = vadd.xlane.f32.xlu0 %v183
      %v185 = vpop.xlane.xlu0 %184
      %v186 = vsel %vm180, %v174, 0.0
      %v187 = vsel %vm180, %v175, 0.0
      %v188 = vadd.f32 %v186, %v187
      %189 = vadd.xlane.f32.xlu0 %v188
      %v190 = vpop.xlane.xlu0 %189
      %v191 = vmul.f32 %v185, 0.00390625
      %v192 = vmul.f32 %v190, 0.00390625
      %v193 = vmul.f32 %v157, %v191
      %v194 = vmul.f32 %v157, %v192
      %196 = vrot.lane.b32.xlu0 %v157, 127
      %v197 = vpop.permute.xlu0 %196
      %v199 = vadd.f32 %v193, %v197
      %v200 = vadd.f32 %v194, %v197
      %v201 = vxor.u32 %v199, 2147483648
      %v202 = vxor.u32 %v200, 2147483648
      %v203 = vmul.f32 %v201, 1.442695
      %v204 = vpow.pop %v203
      %v205 = vmul.f32 %v202, 1.442695
      %v206 = vpow.pop %v205
      %v207 = vadd.f32 %v204, 1.0
      %v208 = vadd.f32 %v206, 1.0
      %v209 = vrcp.pop %v207
      %v210 = vmul.f32 1.0, %v209
      %v211 = vrcp.pop %v208
      %v212 = vmul.f32 1.0, %v211
      %214 = vset.pattern.permute.xlu0 0
      %215 = vperm.xlu0 %214, %v210
      %v216 = vpop.permute.xlu0 %215
      %218 = vset.pattern.permute.xlu0 0
      %219 = vperm.xlu0 %218, %v212
      %v220 = vpop.permute.xlu0 %219
      %v222 = vunpack.c.l.s4 269488144
      %v223 = vunpack.c.0.s8 %v222
      %v224 = vlaneseq
      %v225 = vshrl.u32 %v224, 7
      %v226 = vsub.s32 %v223, %v225
      %v227 = vrot.slane %v216, %v226
      %v229 = vunpack.c.l.s4 269488144
      %v230 = vunpack.c.0.s8 %v229
      %v231 = vlaneseq
      %v232 = vshrl.u32 %v231, 7
      %v233 = vsub.s32 %v230, %v232
      %v234 = vrot.slane %v220, %v233
      %v237 = vmul.f32 %v152, %v227
      %v238 = vmul.f32 %v153, %v234
      %239 = vst [vmem:[%s150] sm:$0xf] %v237
      %240 = vst [vmem:[%s150 + $0x8] sm:$0xf] %v238
      %v244 = vunpack.c.l.s4 1983009808
      %v245 = vunpack.c.0.s8 %v244
      %v246 = vlaneseq
      %v247 = vshrl.u32 %v246, 7
      %v248 = vsub.s32 %v245, %v247
      %v249 = vrot.slane %v155, %v248
      %v250 = vcombine.high %v249, %v249
      %v252 = vunpack.c.l.s4 1983009808
      %v253 = vunpack.c.0.s8 %v252
      %v254 = vlaneseq
      %v255 = vshrl.u32 %v254, 7
      %v256 = vsub.s32 %v253, %v255
      %v257 = vrot.slane %v156, %v256
      %v258 = vcombine.high %v257, %v257
      %v263 = vsel %vm180, %v249, 0.0
      %v264 = vsel %vm180, %v250, 0.0
      %v265 = vadd.f32 %v263, %v264
      %266 = vadd.xlane.f32.xlu0 %v265
      %v267 = vpop.xlane.xlu0 %266
      %v268 = vsel %vm180, %v257, 0.0
      %v269 = vsel %vm180, %v258, 0.0
      %v270 = vadd.f32 %v268, %v269
      %271 = vadd.xlane.f32.xlu0 %v270
      %v272 = vpop.xlane.xlu0 %271
      %v273 = vmul.f32 %v267, 0.00390625
      %v274 = vmul.f32 %v272, 0.00390625
      %v278 = vunpack.c.l.s4 269488144
      %v279 = vunpack.c.0.s8 %v278
      %v280 = vlaneseq
      %v281 = vshrl.u32 %v280, 7
      %v282 = vsub.s32 %v279, %v281
      %v283 = vrot.slane %v273, %v282
      %v285 = vunpack.c.l.s4 269488144
      %v286 = vunpack.c.0.s8 %v285
      %v287 = vlaneseq
      %v288 = vshrl.u32 %v287, 7
      %v289 = vsub.s32 %v286, %v288
      %v290 = vrot.slane %v274, %v289
      %v293 = vsub.f32 %v155, %v283
      %v294 = vsub.f32 %v156, %v290
      %v295 = vmul.f32 %v293, %v293
      %v296 = vmul.f32 %v294, %v294
      %v300 = vunpack.c.l.s4 1983009808
      %v301 = vunpack.c.0.s8 %v300
      %v302 = vlaneseq
      %v303 = vshrl.u32 %v302, 7
      %v304 = vsub.s32 %v301, %v303
      %v305 = vrot.slane %v295, %v304
      %v306 = vcombine.high %v305, %v305
      %v308 = vunpack.c.l.s4 1983009808
      %v309 = vunpack.c.0.s8 %v308
      %v310 = vlaneseq
      %v311 = vshrl.u32 %v310, 7
      %v312 = vsub.s32 %v309, %v311
      %v313 = vrot.slane %v296, %v312
      %v314 = vcombine.high %v313, %v313
      %v319 = vsel %vm180, %v305, 0.0
      %v320 = vsel %vm180, %v306, 0.0
      %v321 = vadd.f32 %v319, %v320
      %322 = vadd.xlane.f32.xlu0 %v321
      %v323 = vpop.xlane.xlu0 %322
      %v324 = vsel %vm180, %v313, 0.0
      %v325 = vsel %vm180, %v314, 0.0
      %v326 = vadd.f32 %v324, %v325
      %327 = vadd.xlane.f32.xlu0 %v326
      %v328 = vpop.xlane.xlu0 %327
      %v329 = vmul.f32 %v323, 0.00390625
      %v330 = vmul.f32 %v328, 0.00390625
      %v331 = vadd.f32 %v329, 1e-05
      %v332 = vadd.f32 %v330, 1e-05
      %v333 = vrsqrt.pop %v331
      %v334 = vrsqrt.pop %v332
      %v338 = vunpack.c.l.s4 269488144
      %v339 = vunpack.c.0.s8 %v338
      %v340 = vlaneseq
      %v341 = vshrl.u32 %v340, 7
      %v342 = vsub.s32 %v339, %v341
      %v343 = vrot.slane %v333, %v342
      %v345 = vunpack.c.l.s4 269488144
      %v346 = vunpack.c.0.s8 %v345
      %v347 = vlaneseq
      %v348 = vshrl.u32 %v347, 7
      %v349 = vsub.s32 %v346, %v348
      %v350 = vrot.slane %v334, %v349
      %v353 = vmul.f32 %v293, %v343
      %v354 = vmul.f32 %v294, %v350
      %355 = vset.pattern.permute.xlu0 4
      %356 = vperm.xlu0 %355, %v157
      %v357 = vpop.permute.xlu0 %356
      %v359 = vunpack.c.l.s4 269488144
      %v360 = vunpack.c.0.s8 %v359
      %v361 = vlaneseq
      %v362 = vshrl.u32 %v361, 7
      %v363 = vsub.s32 %v360, %v362
      %v364 = vrot.slane %v357, %v363
      %v366 = vmul.f32 %v353, %v364
      %v367 = vmul.f32 %v354, %v364
      %368 = vset.pattern.permute.xlu0 5
      %369 = vperm.xlu0 %368, %v157
      %v370 = vpop.permute.xlu0 %369
      %v372 = vunpack.c.l.s4 269488144
      %v373 = vunpack.c.0.s8 %v372
      %v374 = vlaneseq
      %v375 = vshrl.u32 %v374, 7
      %v376 = vsub.s32 %v373, %v375
      %v377 = vrot.slane %v370, %v376
      %v379 = vadd.f32 %v366, %v377
      %v380 = vadd.f32 %v367, %v377
      %381 = vset.pattern.permute.xlu0 2
      %382 = vperm.xlu0 %381, %v157
      %v383 = vpop.permute.xlu0 %382
      %v388 = vunpack.c.l.s4 1983009808
      %v389 = vunpack.c.0.s8 %v388
      %v390 = vlaneseq
      %v391 = vshrl.u32 %v390, 7
      %v392 = vsub.s32 %v389, %v391
      %v393 = vrot.slane %v379, %v392
      %v394 = vcombine.high %v393, %v393
      %v396 = vunpack.c.l.s4 1983009808
      %v397 = vunpack.c.0.s8 %v396
      %v398 = vlaneseq
      %v399 = vshrl.u32 %v398, 7
      %v400 = vsub.s32 %v397, %v399
      %v401 = vrot.slane %v380, %v400
      %v402 = vcombine.high %v401, %v401
      %v407 = vmul.f32 %v383, %v393
      %v408 = vmul.f32 %v383, %v394
      %v409 = vmul.f32 %v383, %v401
      %v410 = vmul.f32 %v383, %v402
      %411 = vset.pattern.permute.xlu0 3
      %412 = vperm.xlu0 %411, %v157
      %v413 = vpop.permute.xlu0 %412
      %v415 = vadd.f32 %v407, %v413
      %v416 = vadd.f32 %v408, %v413
      %v417 = vadd.f32 %v409, %v413
      %v418 = vadd.f32 %v410, %v413
      %v419 = vxor.u32 %v415, 2147483648
      %v420 = vxor.u32 %v416, 2147483648
      %v421 = vxor.u32 %v417, 2147483648
      %v422 = vxor.u32 %v418, 2147483648
      %v423 = vmul.f32 %v419, 1.442695
      %v424 = vpow.pop %v423
      %v425 = vmul.f32 %v420, 1.442695
      %v426 = vpow.pop %v425
      %v427 = vmul.f32 %v421, 1.442695
      %v428 = vpow.pop %v427
      %v429 = vmul.f32 %v422, 1.442695
      %v430 = vpow.pop %v429
      %v431 = vadd.f32 %v424, 1.0
      %v432 = vadd.f32 %v426, 1.0
      %v433 = vadd.f32 %v428, 1.0
      %v434 = vadd.f32 %v430, 1.0
      %v435 = vrcp.pop %v431
      %v436 = vmul.f32 1.0, %v435
      %v437 = vrcp.pop %v432
      %v438 = vmul.f32 1.0, %v437
      %v439 = vrcp.pop %v433
      %v440 = vmul.f32 1.0, %v439
      %v441 = vrcp.pop %v434
      %v442 = vmul.f32 1.0, %v441
      %v447 = vcombine.low %v436, %v438
      %v449 = vunpack.c.l.s4 1983009808
      %v450 = vunpack.c.0.s8 %v449
      %v451 = vlaneseq
      %v452 = vshrl.u32 %v451, 7
      %v453 = vsub.s32 %v450, %v452
      %v454 = vrot.slane %v447, %v453
      %v455 = vcombine.low %v440, %v442
      %v457 = vunpack.c.l.s4 1983009808
      %v458 = vunpack.c.0.s8 %v457
      %v459 = vlaneseq
      %v460 = vshrl.u32 %v459, 7
      %v461 = vsub.s32 %v458, %v460
      %v462 = vrot.slane %v455, %v461
      %v465 = vmul.f32 %v155, %v454
      %v466 = vmul.f32 %v156, %v462
      %s467 = scalar_lea.vmem %s150, 4
      %468 = vst [vmem:[%s467] sm:$0xf] %v465
      %469 = vst [vmem:[%s467 + $0x8] sm:$0xf] %v466
      %s470 = smul.u32 2, %s13
      %p471 = scmp.lt.s32.totalorder %s470, 15
      %s472 = scalar_select %p471, %s470, 15
      %s473 = smul.addr %s472, 4
      %s474 = smul.addr %s473, 2
      %s475 = scalar_lea.vmem %s2, %s474
      // Predicated region
      $region29: #{single_block_forward.1} parent=27 // pred_check
        %p476 = pneg %p78
      $region30: #{single_block_forward.1} parent=27 // pred_check_branch
        %478 = sbr.rel (%p476) target = $region32
      $region31: #{single_block_forward.1} parent=27 // pred_region
        %s479 = smul.u32 2, %s13
      $region32: #{single_block_forward.1} parent=27 // pred_fallthru
        _
    $region28: #{single_block_forward.1} parent=5 // pred_fallthru
      _
    %p480 = scmp.le.s32.totalorder 2, %s8
    // Predicated region
    $region33: #{single_block_forward.1} parent=5 // pred_check
      %p481 = pneg %p480
    $region34: #{single_block_forward.1} parent=5 // pred_check_branch
      %483 = sbr.rel (%p481) target = $region36
    $region35: #{single_block_forward.1} parent=5 // pred_region
      %s484 = ssub.s32 %s8, 2
      // Predicated region
      $region37: #{single_block_forward.1} parent=35 // pred_check
        %p485 = pneg %p84
      $region38: #{single_block_forward.1} parent=35 // pred_check_branch
        %487 = sbr.rel (%p485) target = $region40
      $region39: #{single_block_forward.1} parent=35 // pred_region
        %s488 = smul.u32 2, %s14
        %p489 = scmp.lt.s32.totalorder %s488, 15
        %s490 = scalar_select %p489, %s488, 15
        %s491 = smul.addr %s490, 4
        %s492 = smul.addr %s491, 2
        %s493 = scalar_lea.vmem %s2, %s492
      $region40: #{single_block_forward.1} parent=35 // pred_fallthru
        _
    $region36: #{single_block_forward.1} parent=5 // pred_fallthru
      _
  $region6: #{single_block_forward.1} parent=0 // loop_footer
    %s12 = sadd.s32 1, %s8
  $region7: #{single_block_forward.1} parent=0 // loop_footer_branch
    %7 = sbr.rel target = $region3
  $region8: #{single_block_forward.1} parent=0 // loop_exit
    _

</llo_original>
